<compile_context>
chip_gen: v5e
topology: v5e:2x2
jax: 0.10.0
libtpu: 0.0.40
codegen_flags: <defaults>
</compile_context>

<pallas_src>
import functools

import jax
import jax.numpy as jnp
from jax.experimental import pallas as pl
from jax.experimental.pallas import tpu as pltpu


def _round_up(x, m):
    return ((x + m - 1) // m) * m


def _sublane_multiple(dtype):
    # Sub-32-bit dtypes pack along sublanes: bf16 -> 16 rows, int8/fp8 -> 32.
    return {4: 8, 2: 16, 1: 32}.get(jnp.dtype(dtype).itemsize, 8)


def _vmem_budget_bytes():
    """~85% of this generation's VMEM (v5e/v6e: 128 MiB, v7x: 64 MiB)."""
    cap = 64 * 1024 * 1024  # conservative fallback, safe on every generation
    try:
        info = pltpu.get_tpu_info()
        cap = int(getattr(info, "vmem_capacity_bytes", cap)) or cap
    except Exception:
        pass
    return int(cap * 0.85)


# --------------------------------------------------------------------------
# Kernels
# --------------------------------------------------------------------------
def _linear_kernel_f32(x_ref, w_ref, b_ref, o_ref):
    # x_ref: (tm, tk), w_ref: (tk, tn) pre-transposed, b_ref: (1, tn),
    # o_ref: (tm, tn) float32.  The output block is resident across the K grid
    # axis, so accumulate directly into it (no scratch copy).
    @pl.when(pl.program_id(2) == 0)
    def _init():
        # Fold the bias into the accumulator init.
        o_ref[...] = jnp.broadcast_to(b_ref[...].astype(o_ref.dtype), o_ref.shape)

    # Canonical MXU feeding: contract last dim of x with first dim of w.
    o_ref[...] += jax.lax.dot_general(
        x_ref[...],
        w_ref[...],
        dimension_numbers=(((1,), (0,)), ((), ())),
        preferred_element_type=jnp.float32,
    )


def _linear_kernel_acc(x_ref, w_ref, b_ref, o_ref, acc_ref):
    # Variant for non-f32 outputs: f32 VMEM accumulator + downcast on writeback.
    k = pl.program_id(2)

    @pl.when(k == 0)
    def _init():
        acc_ref[...] = jnp.broadcast_to(
            b_ref[...].astype(jnp.float32), acc_ref.shape
        )

    acc_ref[...] += jax.lax.dot_general(
        x_ref[...],
        w_ref[...],
        dimension_numbers=(((1,), (0,)), ((), ())),
        preferred_element_type=jnp.float32,
    )

    @pl.when(k == pl.num_programs(2) - 1)
    def _finalize():
        o_ref[...] = acc_ref[...].astype(o_ref.dtype)


# --------------------------------------------------------------------------
# One-time parameter preparation (hoisted out of the per-call path)
# --------------------------------------------------------------------------
def prepare_classifier_params(weight, bias, *, tn_target=1024, tk_target=2048,
                              tm_cap=512, vmem_budget=None):
    """Pad + pre-transpose nn.Linear params ONCE at model init.

    weight: (num_classes, input_size)  (PyTorch nn.Linear layout)
    bias:   (num_classes,)
    Returns a dict consumed by `_linear_pallas`.
    """
    num_classes, input_size = weight.shape
    assert bias.shape == (num_classes,)
    w_bytes = jnp.dtype(weight.dtype).itemsize
    budget = _vmem_budget_bytes() if vmem_budget is None else int(vmem_budget)

    n128 = _round_up(num_classes, 128)
    k128 = _round_up(input_size, 128)
    tn = min(int(tn_target), n128)
    tk = min(int(tk_target), k128)

    # Prefer >= 2 tiles along the (parallel) N axis so the grid can shard
    # across v7x's two TensorCores; harmless on 1-TC chips (W is not
    # re-streamed when only N is split).
    if tn == n128 and n128 >= 256:
        tn = max(128, ((n128 // 2) // 128) * 128)

    # Shrink (tk, tn) until the nominal double-buffered footprint fits VMEM.
    def _footprint(tm_, tn_, tk_):
        return (2 * tm_ * tk_ * 4          # x tiles (f32 activations)
                + 2 * tk_ * tn_ * w_bytes  # weight tiles
                + 2 * tn_ * w_bytes        # bias tiles
                + 2 * tm_ * tn_ * 4        # output tiles
                + tm_ * tn_ * 4)           # worst-case f32 accumulator

    while _footprint(tm_cap, tn, tk) > budget and (tk > 128 or tn > 128):
        if tk >= tn and tk > 128:
            tk = max(128, tk // 2)
        elif tn > 128:
            tn = max(128, tn // 2)

    n_pad = _round_up(num_classes, tn)
    k_pad = _round_up(input_size, tk)

    # One-time HBM copies (NOT per forward call): pad, then store W as (K, N)
    # so the kernel needs no in-kernel transpose.
    w_kn = jnp.pad(
        weight, ((0, n_pad - num_classes), (0, k_pad - input_size))
    ).T
    b_2d = jnp.pad(bias, (0, n_pad - num_classes)).reshape(1, n_pad)
    # NOTE: casting w_kn (and x) to bf16 here is a drop-in throughput/bandwidth
    # win on v6e/v7x if reduced precision is acceptable; kept f32 to match
    # nn.Linear semantics exactly.

    return dict(
        w_kn=w_kn, b_2d=b_2d,
        num_classes=int(num_classes), input_size=int(input_size),
        tn=int(tn), tk=int(tk), tm_cap=int(tm_cap), vmem_budget=int(budget),
    )


# --------------------------------------------------------------------------
# Forward pass
# --------------------------------------------------------------------------
@functools.partial(
    jax.jit,
    static_argnames=("num_classes", "input_size", "tn", "tk", "tm_cap",
                     "vmem_budget"))
def _linear_pallas(x, w_kn, b_2d, *, num_classes, input_size, tn, tk, tm_cap,
                   vmem_budget):
    """y = x @ W^T + b with W pre-prepared as (K_pad, N_pad)."""
    batch, k_in = x.shape
    assert k_in == input_size, "x feature dim must match the prepared weight"
    k_pad, n_pad = w_kn.shape
    out_dtype = x.dtype

    x_bytes = jnp.dtype(x.dtype).itemsize
    w_bytes = jnp.dtype(w_kn.dtype).itemsize
    out_bytes = jnp.dtype(out_dtype).itemsize
    direct_acc = out_dtype == jnp.float32

    # M-grid as small as possible (ideally 1) so W is streamed from HBM once.
    sub_m = _sublane_multiple(x.dtype)
    tm = min(_round_up(batch, sub_m), _round_up(tm_cap, sub_m))

    def _footprint(tm_):
        f = (2 * tm_ * tk * x_bytes + 2 * tk * tn * w_bytes
             + 2 * tn * w_bytes + 2 * tm_ * tn * out_bytes)
        if not direct_acc:
            f += tm_ * tn * 4
        return f

    while _footprint(tm) > vmem_budget and tm > sub_m:
        tm = max(sub_m, ((tm // 2) // sub_m) * sub_m)

    m_pad = _round_up(batch, tm)

    # Only the (small) activation is padded per call.
    x_p = x
    if (m_pad, k_pad) != (batch, k_in):
        x_p = jnp.pad(x, ((0, m_pad - batch), (0, k_pad - k_in)))

    grid = (m_pad // tm, n_pad // tn, k_pad // tk)

    cost = pl.CostEstimate(
        flops=2 * m_pad * n_pad * k_pad,
        transcendentals=0,
        bytes_accessed=(m_pad * k_pad * x_bytes + k_pad * n_pad * w_bytes
                        + n_pad * w_bytes + m_pad * n_pad * out_bytes),
    )

    in_specs = [
        pl.BlockSpec((tm, tk), lambda i, j, k: (i, k)),   # x tile
        pl.BlockSpec((tk, tn), lambda i, j, k: (k, j)),   # pre-transposed W tile
        pl.BlockSpec((1, tn), lambda i, j, k: (0, j)),    # bias tile
    ]
    out_spec = pl.BlockSpec((tm, tn), lambda i, j, k: (i, j))
    cparams = pltpu.CompilerParams(
        dimension_semantics=("parallel", "parallel", "arbitrary"),
        vmem_limit_bytes=int(min(max(vmem_budget, 16 * 1024 * 1024),
                                 112 * 1024 * 1024)),
    )

    if direct_acc:
        out_padded = pl.pallas_call(
            _linear_kernel_f32,
            out_shape=jax.ShapeDtypeStruct((m_pad, n_pad), out_dtype),
            grid=grid,
            in_specs=in_specs,
            out_specs=out_spec,
            compiler_params=cparams,
            cost_estimate=cost,
        )(x_p, w_kn, b_2d)
    else:
        out_padded = pl.pallas_call(
            _linear_kernel_acc,
            out_shape=jax.ShapeDtypeStruct((m_pad, n_pad), out_dtype),
            grid=grid,
            in_specs=in_specs,
            out_specs=out_spec,
            scratch_shapes=[pltpu.VMEM((tm, tn), jnp.float32)],
            compiler_params=cparams,
            cost_estimate=cost,
        )(x_p, w_kn, b_2d)

    if (m_pad, n_pad) != (batch, num_classes):
        out_padded = out_padded[:batch, :num_classes]
    return out_padded


class Classifier:
    """Pallas-TPU equivalent of the PyTorch `Classifier` module (one nn.Linear)."""

    def __init__(self, input_size, num_classes, *, key=None, dtype=jnp.float32):
        if key is None:
            key = jax.random.PRNGKey(0)
        kw, kb = jax.random.split(key)
        bound = 1.0 / (input_size ** 0.5)
        self.weight = jax.random.uniform(
            kw, (num_classes, input_size), dtype, -bound, bound)
        self.bias = jax.random.uniform(kb, (num_classes,), dtype, -bound, bound)
        # Weight padding / relayout done ONCE here, not on every forward call.
        self._params = prepare_classifier_params(self.weight, self.bias)

    def __call__(self, x):
        p = self._params
        return _linear_pallas(
            x, p["w_kn"], p["b_2d"],
            num_classes=p["num_classes"], input_size=p["input_size"],
            tn=p["tn"], tk=p["tk"], tm_cap=p["tm_cap"],
            vmem_budget=p["vmem_budget"])


if __name__ == "__main__":
    key = jax.random.PRNGKey(0)

    # --- Test 1: small shapes consistent with the module (Linear(32, 10)) ---
    batch, input_size, num_classes = 8, 32, 10
    model = Classifier(input_size, num_classes, key=key)
    x = jax.random.normal(jax.random.fold_in(key, 1), (batch, input_size),
                          jnp.float32)

    out = jax.block_until_ready(model(x))
    ref = x @ model.weight.T + model.bias
    assert out.shape == (batch, num_classes)
    assert jnp.allclose(out, ref, atol=1e-5, rtol=1e-5)

    # --- Test 2: exercise the multi-tile grid + padding path (small tiles) ---
    batch2, input_size2, num_classes2 = 16, 300, 260
    k2 = jax.random.split(jax.random.fold_in(key, 2), 3)
    bound2 = 1.0 / (input_size2 ** 0.5)
    weight2 = jax.random.uniform(
        k2[0], (num_classes2, input_size2), jnp.float32, -bound2, bound2)
    bias2 = jax.random.uniform(
        k2[1], (num_classes2,), jnp.float32, -bound2, bound2)
    x2 = jax.random.normal(k2[2], (batch2, input_size2), jnp.float32)

    params2 = prepare_classifier_params(
        weight2, bias2, tn_target=128, tk_target=128, tm_cap=8)
    out2 = jax.block_until_ready(_linear_pallas(
        x2, params2["w_kn"], params2["b_2d"],
        num_classes=params2["num_classes"], input_size=params2["input_size"],
        tn=params2["tn"], tk=params2["tk"], tm_cap=params2["tm_cap"],
        vmem_budget=params2["vmem_budget"]))
    ref2 = x2 @ weight2.T + bias2
    assert out2.shape == (batch2, num_classes2)
    assert jnp.allclose(out2, ref2, atol=1e-4, rtol=1e-4)

    print("KERNEL_OK")
</pallas_src>

<mosaic_0001>
module attributes {stable_mosaic.version = 11 : i64} {
  func.func @_linear_kernel_f32(%arg0: i32, %arg1: i32, %arg2: i32, %arg3: memref<8x128xf32, #tpu.memory_space<vmem>>, %arg4: memref<128x128xf32, #tpu.memory_space<vmem>>, %arg5: memref<1x128xf32, #tpu.memory_space<vmem>>, %arg6: memref<8x128xf32, #tpu.memory_space<vmem>>) attributes {dimension_semantics = [#tpu.dimension_semantics<parallel>, #tpu.dimension_semantics<parallel>, #tpu.dimension_semantics<arbitrary>], iteration_bounds = array<i64: 1, 1, 1>, scalar_prefetch = 0 : i64, scratch_operands = 0 : i64, tpu.core_type = #tpu.core_type<tc>, window_params = [{transform_indices = @transform_0, window_bounds = array<i64: 8, 128>}, {transform_indices = @transform_1, window_bounds = array<i64: 128, 128>}, {transform_indices = @transform_2, window_bounds = array<i64: 1, 128>}, {transform_indices = @transform_3, window_bounds = array<i64: 8, 128>}]} {
    %c0_i32 = arith.constant 0 : i32
    %0 = arith.cmpi eq, %arg2, %c0_i32 : i32
    %1 = arith.extui %0 : i1 to i32
    %c0_i32_0 = arith.constant 0 : i32
    %2 = arith.cmpi ne, %1, %c0_i32_0 : i32
    scf.if %2 {
      %c0_8 = arith.constant 0 : index
      %c0_9 = arith.constant 0 : index
      %9 = vector.load %arg5[%c0_8, %c0_9] : memref<1x128xf32, #tpu.memory_space<vmem>>, vector<1x128xf32>
      %10 = vector.shape_cast %9 : vector<1x128xf32> to vector<1x128xf32>
      %11 = vector.broadcast %10 : vector<1x128xf32> to vector<8x128xf32>
      %c0_10 = arith.constant 0 : index
      %c0_11 = arith.constant 0 : index
      %12 = vector.load %arg6[%c0_10, %c0_11] : memref<8x128xf32, #tpu.memory_space<vmem>>, vector<8x128xf32>
      tpu.vector_store %arg6[%c0_10, %c0_11], %11 {strides = array<i32>} : memref<8x128xf32, #tpu.memory_space<vmem>>, vector<8x128xf32>,
    } else {
    }
    %c0 = arith.constant 0 : index
    %c0_1 = arith.constant 0 : index
    %3 = vector.load %arg6[%c0, %c0_1] : memref<8x128xf32, #tpu.memory_space<vmem>>, vector<8x128xf32>
    %c0_2 = arith.constant 0 : index
    %c0_3 = arith.constant 0 : index
    %4 = vector.load %arg3[%c0_2, %c0_3] : memref<8x128xf32, #tpu.memory_space<vmem>>, vector<8x128xf32>
    %c0_4 = arith.constant 0 : index
    %c0_5 = arith.constant 0 : index
    %5 = vector.load %arg4[%c0_4, %c0_5] : memref<128x128xf32, #tpu.memory_space<vmem>>, vector<128x128xf32>
    %cst = arith.constant dense<0.000000e+00> : vector<8x128xf32>
    %6 = tpu.matmul %4, %5, %cst {dimension_numbers = #tpu.dot_dimension_numbers<[1], [0], [0], [1], [0, 0, 1, 1], [], []>} : vector<8x128xf32>, vector<128x128xf32>, vector<8x128xf32> -> vector<8x128xf32>
    %7 = arith.addf %3, %6 : vector<8x128xf32>
    %c0_6 = arith.constant 0 : index
    %c0_7 = arith.constant 0 : index
    %8 = vector.load %arg6[%c0_6, %c0_7] : memref<8x128xf32, #tpu.memory_space<vmem>>, vector<8x128xf32>
    tpu.vector_store %arg6[%c0_6, %c0_7], %7 {strides = array<i32>} : memref<8x128xf32, #tpu.memory_space<vmem>>, vector<8x128xf32>,
    return
  }
  func.func @transform_0(%arg0: i32, %arg1: i32, %arg2: i32) -> (i32, i32) {
    %c0_i32 = arith.constant 0 : i32
    return %arg0, %arg2 : i32, i32
  }
  func.func @transform_1(%arg0: i32, %arg1: i32, %arg2: i32) -> (i32, i32) {
    %c0_i32 = arith.constant 0 : i32
    return %arg2, %arg1 : i32, i32
  }
  func.func @transform_2(%arg0: i32, %arg1: i32, %arg2: i32) -> (i32, i32) {
    %c0_i32 = arith.constant 0 : i32
    %c0_i32_0 = arith.constant 0 : i32
    return %c0_i32, %arg1 : i32, i32
  }
  func.func @transform_3(%arg0: i32, %arg1: i32, %arg2: i32) -> (i32, i32) {
    %c0_i32 = arith.constant 0 : i32
    return %arg0, %arg1 : i32, i32
  }
}

</mosaic_0001>

<llo_original>
// kernel: _linear_pallas.1
$region0: #{_linear_pallas.1}
  #allocation0 [shape = 'u32[]', space=smem, size = 0x4, offset = 0x4, fixed_abs, tag = 'smem constant byte address 0x4 - core index']
  #allocation1 [shape = 'u32[72,128]{1,0:T(1,128)}', space=vmem, size = 0x9000, scoped, tag = 'internal scratch']
  %s0 = inlined_call_operand.vmem [shape: f32[8,128], index: 0, kind: input, shape index: {}]
  %s1 = inlined_call_operand.hbm [shape: f32[128,128], index: 1, kind: input, shape index: {}]
  %s2 = inlined_call_operand.vmem [shape: f32[1,128], index: 2, kind: input, shape index: {}]
  %s3 = inlined_call_operand.hbm [shape: f32[8,128], index: 3, kind: output, shape index: {}]
  %s4 = sld [smem:[#allocation0]]
  $region30: #{_linear_pallas.1} parent=0
    _
  %s6 = ssub.s32 1, %s4
  %s7 = scalar_select 0, %s6, %s4
  $region1: #{_linear_pallas.1} parent=0
    #allocation2 [shape = 'u8[65536]{0}', space=vmem, size = 0x10000, scoped, tag = 'input window, operand 1, single buffered']
    #allocation3 [shape = 's32[1]{0}', space=sflag, size = 0x4, scoped, tag = 'scoped memory for _linear_pallas.1']
    #allocation4 [shape = 's32[1]{0}', space=sflag, size = 0x4, scoped, tag = 'scoped memory for _linear_pallas.1']
    #allocation5 [shape = 'u8[4096]{0}', space=vmem, size = 0x1000, scoped, tag = 'output window, operand 0, single buffered']
    %8 = vsyncpa [#allocation3], 0
    %9 = vsyncpa [#allocation4], 0
    // Predicated region
    $region2: #{_linear_pallas.1} parent=1 // pred_check
      _
    $region3: #{_linear_pallas.1} parent=1 // pred_check_branch
      %11 = sbr.rel (0) target = $region5
    $region4: #{_linear_pallas.1} parent=1 // pred_region
      _
    $region5: #{_linear_pallas.1} parent=1 // pred_fallthru
      _
    // Predicated region
    $region6: #{_linear_pallas.1} parent=1 // pred_check
      _
    $region7: #{_linear_pallas.1} parent=1 // pred_check_branch
      %13 = sbr.rel (0) target = $region9
    $region8: #{_linear_pallas.1} parent=1 // pred_region
      %15 = vsyncadd [#allocation3], 0
      %s16 = sshll.u32 %s1, 4
      %s17 = int_to_ptr.hbm [resolvable:$true] %s16
      %s18 = sshll.u32 [#allocation2], 4
      %s19 = int_to_ptr.vmem [resolvable:$true] %s18
      %24 = dma.hbm_to_vmem [thread:$0]  %s17, 2048, %s19, [#allocation3], 128, 128, 8
    $region9: #{_linear_pallas.1} parent=1 // pred_fallthru
      _
    // Predicated region
    $region10: #{_linear_pallas.1} parent=1 // pred_check
      _
    $region11: #{_linear_pallas.1} parent=1 // pred_check_branch
      %26 = sbr.rel (0) target = $region13
    $region12: #{_linear_pallas.1} parent=1 // pred_region
      _
    $region13: #{_linear_pallas.1} parent=1 // pred_fallthru
      _
    // Predicated region
    $region14: #{_linear_pallas.1} parent=1 // pred_check
      _
    $region15: #{_linear_pallas.1} parent=1 // pred_check_branch
      %28 = sbr.rel (0) target = $region17
    $region16: #{_linear_pallas.1} parent=1 // pred_region
      %30 = dma.done [#allocation3], 2048
    $region17: #{_linear_pallas.1} parent=1 // pred_fallthru
      _
    %p31 = scmp.eq.s32.totalorder 0, 0
    // Predicated region
    $region18: #{_linear_pallas.1} parent=1 // pred_check
      %p32 = pneg %p31
    $region19: #{_linear_pallas.1} parent=1 // pred_check_branch
      %34 = sbr.rel (%p32) target = $region21
    $region20: #{_linear_pallas.1} parent=1 // pred_region
      %v35 = vld [vmem:[%s2] sm:$0x1]
      %v37 = vperm.slane %v35, 0
      %39 = vst [vmem:[#allocation5] sm:$0xff] %v37
    $region21: #{_linear_pallas.1} parent=1 // pred_fallthru
      _
    %v40 = vld [vmem:[#allocation5] sm:$0xff]
    %v41 = vld [vmem:[%s0] sm:$0xff]
    %v42 = vld [vmem:[#allocation2] sm:$0xff]
    %v43 = vld [vmem:[#allocation2 + $0x8] sm:$0xff]
    %v44 = vld [vmem:[#allocation2 + $0x10] sm:$0xff]
    %v45 = vld [vmem:[#allocation2 + $0x18] sm:$0xff]
    %v46 = vld [vmem:[#allocation2 + $0x20] sm:$0xff]
    %v47 = vld [vmem:[#allocation2 + $0x28] sm:$0xff]
    %v48 = vld [vmem:[#allocation2 + $0x30] sm:$0xff]
    %v49 = vld [vmem:[#allocation2 + $0x38] sm:$0xff]
    %v50 = vld [vmem:[#allocation2 + $0x40] sm:$0xff]
    %v51 = vld [vmem:[#allocation2 + $0x48] sm:$0xff]
    %v52 = vld [vmem:[#allocation2 + $0x50] sm:$0xff]
    %v53 = vld [vmem:[#allocation2 + $0x58] sm:$0xff]
    %v54 = vld [vmem:[#allocation2 + $0x60] sm:$0xff]
    %v55 = vld [vmem:[#allocation2 + $0x68] sm:$0xff]
    %v56 = vld [vmem:[#allocation2 + $0x70] sm:$0xff]
    %v57 = vld [vmem:[#allocation2 + $0x78] sm:$0xff]
    %58 = vmatpush.msra.mxu0 %v57
    %59 = vmatpush.msra.mxu0 %v56
    %60 = vmatpush.msra.mxu0 %v55
    %61 = vmatpush.msra.mxu0 %v54
    %62 = vmatpush.msra.mxu0 %v53
    %63 = vmatpush.msra.mxu0 %v52
    %64 = vmatpush.msra.mxu0 %v51
    %65 = vmatpush.msra.mxu0 %v50
    %66 = vmatpush.msra.mxu0 %v49
    %67 = vmatpush.msra.mxu0 %v48
    %68 = vmatpush.msra.mxu0 %v47
    %69 = vmatpush.msra.mxu0 %v46
    %70 = vmatpush.msra.mxu0 %v45
    %71 = vmatpush.msra.mxu0 %v44
    %72 = vmatpush.msra.mxu0 %v43
    %73 = vmatpush.msra.mxu0 %v42
    %74 = vmatmul.f32.gmra.mxu0 %v41
    %v75 = vpop.f32.mrf.mxu0
    %v76 = vadd.f32 0.0, %v75
    %77 = vdwg.mxu0
    %v78 = vadd.f32 %v40, %v76
    %79 = vst [vmem:[#allocation5] sm:$0xff] %v78
    // Predicated region
    $region22: #{_linear_pallas.1} parent=1 // pred_check
      _
    $region23: #{_linear_pallas.1} parent=1 // pred_check_branch
      %81 = sbr.rel (0) target = $region25
    $region24: #{_linear_pallas.1} parent=1 // pred_region
      %83 = vsyncadd [#allocation4], 0
      %s85 = sshll.u32 [#allocation5], 4
      %s86 = int_to_ptr.vmem [resolvable:$true] %s85
      %s87 = sshll.u32 %s3, 4
      %s88 = int_to_ptr.hbm [resolvable:$true] %s87
      %90 = dma.vmem_to_hbm [thread:$0]  %s86, 128, %s88, [#allocation4]
    $region25: #{_linear_pallas.1} parent=1 // pred_fallthru
      _
    // Predicated region
    $region26: #{_linear_pallas.1} parent=1 // pred_check
      _
    $region27: #{_linear_pallas.1} parent=1 // pred_check_branch
      %92 = sbr.rel (0) target = $region29
    $region28: #{_linear_pallas.1} parent=1 // pred_region
      %94 = dma.done [#allocation4], 128
    $region29: #{_linear_pallas.1} parent=1 // pred_fallthru
      _
    %95 = vsyncpa [#allocation3], 1
    %96 = vsyncpa [#allocation4], 1

</llo_original>
